<compile_context>
chip_gen: v7x
topology: tpu7x:2x2x1
jax: 0.10.0
libtpu: 0.0.40
codegen_flags: <defaults>
</compile_context>

<pallas_src>
import functools

import jax
import jax.numpy as jnp
from jax.experimental import pallas as pl
from jax.experimental.pallas import tpu as pltpu


def _assoc_loss_kernel(a_ref, b_ref, loss_ref, acc_ref, *, weight, n_total,
                       m_classes):
    i = pl.program_id(0)

    @pl.when(i == 0)
    def _():
        acc_ref[...] = jnp.zeros_like(acc_ref)

    a = a_ref[...]                                    # (tn, D), native dtype
    b = b_ref[...]                                    # (M,  D), native dtype

    # sim = a @ b.T, contracting over D directly (no XLU transpose of b),
    # f32 accumulation on the MXU.
    sim = jax.lax.dot_general(
        a, b,
        dimension_numbers=(((1,), (1,)), ((), ())),
        preferred_element_type=jnp.float32)           # (tn, M) f32

    # Mask rows past N when the last tile is ragged (no-op when tn | N).
    tn = sim.shape[0]
    row_ids = jax.lax.broadcasted_iota(jnp.int32, (tn, 1), 0) + i * tn
    valid = row_ids < n_total                         # (tn, 1) bool
    sim = jnp.where(valid, sim, 0.0)

    # Numerically stable softmax over M, fused with the mean-over-N
    # accumulation.  The divide is an EUP reciprocal + VPU multiply.
    rmax = jnp.max(sim, axis=1, keepdims=True)        # (tn, 1)
    e = jnp.exp(sim - rmax)                           # (tn, M)
    inv = pl.reciprocal(jnp.sum(e, axis=1, keepdims=True))   # (tn, 1), exact
    rows = jnp.where(valid, e * inv, 0.0)             # softmax rows
    acc_ref[...] += jnp.sum(rows, axis=0, keepdims=True)     # (1, M)

    @pl.when(i == pl.num_programs(0) - 1)
    def _():
        inputs = acc_ref[...] * jnp.float32(1.0 / n_total)   # (1, M)
        # -weight * (1/M) * sum(log(1e-8 + inputs))
        # (the original outer .mean() is over a size-1 dim -> no-op)
        loss_ref[...] = jnp.float32(-weight / m_classes) * jnp.sum(
            jnp.log(jnp.float32(1e-8) + inputs), keepdims=True)


def association_loss(a, b, weight=1.0, block_n=256):
    """Pallas TPU implementation of AssociationLoss.forward(a, b)."""
    n, d = a.shape
    m, d_b = b.shape
    assert d == d_b, "embedding dims of a and b must match"

    # N tile: whole array if small, otherwise a sublane-aligned (mult. of 8)
    # tile so the (8, 128) block constraint is satisfied.
    tn = n if n <= block_n else max(8, (block_n // 8) * 8)
    grid_n = pl.cdiv(n, tn)

    kernel = functools.partial(
        _assoc_loss_kernel, weight=float(weight), n_total=n, m_classes=m)

    out = pl.pallas_call(
        kernel,
        out_shape=jax.ShapeDtypeStruct((1, 1), jnp.float32),
        grid_spec=pltpu.PrefetchScalarGridSpec(
            num_scalar_prefetch=0,
            grid=(grid_n,),
            in_specs=[
                pl.BlockSpec((tn, d), lambda i: (i, 0)),   # a: pipelined tiles
                pl.BlockSpec((m, d), lambda i: (0, 0)),    # b: resident
            ],
            out_specs=pl.BlockSpec((1, 1), lambda i: (0, 0)),
            scratch_shapes=[pltpu.VMEM((1, m), jnp.float32)],
        ),
        compiler_params=pltpu.CompilerParams(
            dimension_semantics=("arbitrary",)),           # N is a reduction
        cost_estimate=pl.CostEstimate(
            flops=2 * n * m * d,
            transcendentals=n * m,
            bytes_accessed=(n * d + m * d) * a.dtype.itemsize + 4),
    )(a, b)
    return out[0, 0]


def _association_loss_ref(a, b, weight=1.0):
    """Pure-JAX reference (mirrors the PyTorch code) for validation."""
    sim = jax.lax.dot_general(a, b, (((1,), (1,)), ((), ())),
                              preferred_element_type=jnp.float32)
    a2b = jax.nn.softmax(sim.astype(jnp.float32), axis=1)
    inputs = jnp.mean(a2b, axis=0, keepdims=True)
    targets = jnp.full_like(inputs, 1.0 / inputs.shape[1])
    return -weight * jnp.mean(jnp.sum(targets * jnp.log(1e-8 + inputs), axis=1))


if __name__ == "__main__":
    # Small deterministic inputs: N=16 text embeddings, M=8 shape embeddings,
    # hidden dim D=32.  block_n=8 -> grid=(2,) so the accumulator/init/finalize
    # path is exercised.
    key = jax.random.PRNGKey(0)
    ka, kb = jax.random.split(key)
    a = jax.random.normal(ka, (16, 32), dtype=jnp.float32)
    b = jax.random.normal(kb, (8, 32), dtype=jnp.float32)

    loss = association_loss(a, b, weight=1.0, block_n=8)
    loss = jax.block_until_ready(loss)

    ref = jax.block_until_ready(_association_loss_ref(a, b, weight=1.0))
    assert jnp.allclose(loss, ref, rtol=1e-5, atol=1e-5), (loss, ref)

    print("KERNEL_OK")
</pallas_src>

<mosaic_0001>
module attributes {stable_mosaic.version = 11 : i64} {
  func.func @_assoc_loss_kernel(%arg0: i32, %arg1: memref<8x32xf32, #tpu.memory_space<vmem>>, %arg2: memref<8x32xf32, #tpu.memory_space<vmem>>, %arg3: memref<1x1xf32, #tpu.memory_space<vmem>>, %arg4: memref<1x8xf32, #tpu.memory_space<vmem>>) attributes {dimension_semantics = [#tpu.dimension_semantics<arbitrary>], iteration_bounds = array<i64: 2>, scalar_prefetch = 0 : i64, scratch_operands = 1 : i64, tpu.core_type = #tpu.core_type<tc>, window_params = [{transform_indices = @transform_0, window_bounds = array<i64: 8, 32>}, {pipeline_mode = #tpu.pipeline_mode<synchronous>, transform_indices = @transform_1, window_bounds = array<i64: 8, 32>}, {pipeline_mode = #tpu.pipeline_mode<synchronous>, transform_indices = @transform_2, window_bounds = array<i64: 1, 1>}]} {
    %c0_i32 = arith.constant 0 : i32
    %0 = arith.cmpi eq, %arg0, %c0_i32 : i32
    %1 = arith.extui %0 : i1 to i32
    %c0_i32_0 = arith.constant 0 : i32
    %2 = arith.cmpi ne, %1, %c0_i32_0 : i32
    scf.if %2 {
      %cst_14 = arith.constant 0.000000e+00 : f32
      %38 = vector.broadcast %cst_14 : f32 to vector<1x8xf32>
      %c0_15 = arith.constant 0 : index
      %c0_16 = arith.constant 0 : index
      %39 = vector.load %arg4[%c0_15, %c0_16] : memref<1x8xf32, #tpu.memory_space<vmem>>, vector<1x8xf32>
      tpu.vector_store %arg4[%c0_15, %c0_16], %38 {strides = array<i32>} : memref<1x8xf32, #tpu.memory_space<vmem>>, vector<1x8xf32>,
    } else {
    }
    %c0 = arith.constant 0 : index
    %c0_1 = arith.constant 0 : index
    %3 = vector.load %arg1[%c0, %c0_1] : memref<8x32xf32, #tpu.memory_space<vmem>>, vector<8x32xf32>
    %c0_2 = arith.constant 0 : index
    %c0_3 = arith.constant 0 : index
    %4 = vector.load %arg2[%c0_2, %c0_3] : memref<8x32xf32, #tpu.memory_space<vmem>>, vector<8x32xf32>
    %cst = arith.constant dense<0.000000e+00> : vector<8x8xf32>
    %5 = tpu.matmul %3, %4, %cst {dimension_numbers = #tpu.dot_dimension_numbers<[1], [1], [0], [0], [0, 0, 1, 0], [], []>} : vector<8x32xf32>, vector<8x32xf32>, vector<8x8xf32> -> vector<8x8xf32>
    %6 = tpu.iota {dimensions = array<i32: 0>} : vector<8x1xi32>
    %c8_i32 = arith.constant 8 : i32
    %7 = arith.muli %arg0, %c8_i32 : i32
    %8 = vector.broadcast %7 : i32 to vector<8x1xi32>
    %9 = arith.addi %6, %8 : vector<8x1xi32>
    %c16_i32 = arith.constant 16 : i32
    %10 = vector.broadcast %c16_i32 : i32 to vector<8x1xi32>
    %11 = arith.cmpi slt, %9, %10 : vector<8x1xi32>
    %cst_4 = arith.constant 0.000000e+00 : f32
    %12 = vector.shape_cast %11 : vector<8x1xi1> to vector<8x1xi1>
    %13 = vector.broadcast %12 : vector<8x1xi1> to vector<8x8xi1>
    %14 = vector.broadcast %cst_4 : f32 to vector<8x8xf32>
    %15 = arith.select %13, %5, %14 : vector<8x8xi1>, vector<8x8xf32>
    %cst_5 = arith.constant dense<0xFF800000> : vector<8xf32>
    %16 = vector.multi_reduction <maximumf>, %15, %cst_5 [1] : vector<8x8xf32> to vector<8xf32>
    %17 = vector.shape_cast %16 : vector<8xf32> to vector<8x1xf32>
    %18 = vector.broadcast %17 : vector<8x1xf32> to vector<8x8xf32>
    %19 = arith.subf %15, %18 : vector<8x8xf32>
    %20 = math.exp %19 : vector<8x8xf32>
    %cst_6 = arith.constant dense<0.000000e+00> : vector<8xf32>
    %21 = vector.multi_reduction <add>, %20, %cst_6 [1] : vector<8x8xf32> to vector<8xf32>
    %22 = vector.shape_cast %21 : vector<8xf32> to vector<8x1xf32>
    %23 = tpu.reciprocal %22 : vector<8x1xf32> -> vector<8x1xf32>
    %24 = vector.broadcast %23 : vector<8x1xf32> to vector<8x8xf32>
    %25 = arith.mulf %20, %24 : vector<8x8xf32>
    %cst_7 = arith.constant 0.000000e+00 : f32
    %26 = vector.shape_cast %11 : vector<8x1xi1> to vector<8x1xi1>
    %27 = vector.broadcast %26 : vector<8x1xi1> to vector<8x8xi1>
    %28 = vector.broadcast %cst_7 : f32 to vector<8x8xf32>
    %29 = arith.select %27, %25, %28 : vector<8x8xi1>, vector<8x8xf32>
    %c0_8 = arith.constant 0 : index
    %c0_9 = arith.constant 0 : index
    %30 = vector.load %arg4[%c0_8, %c0_9] : memref<1x8xf32, #tpu.memory_space<vmem>>, vector<1x8xf32>
    %cst_10 = arith.constant dense<0.000000e+00> : vector<8xf32>
    %31 = vector.multi_reduction <add>, %29, %cst_10 [0] : vector<8x8xf32> to vector<8xf32>
    %32 = vector.shape_cast %31 : vector<8xf32> to vector<1x8xf32>
    %33 = arith.addf %30, %32 : vector<1x8xf32>
    %c0_11 = arith.constant 0 : index
    %c0_12 = arith.constant 0 : index
    %34 = vector.load %arg4[%c0_11, %c0_12] : memref<1x8xf32, #tpu.memory_space<vmem>>, vector<1x8xf32>
    tpu.vector_store %arg4[%c0_11, %c0_12], %33 {strides = array<i32>} : memref<1x8xf32, #tpu.memory_space<vmem>>, vector<1x8xf32>,
    %c1_i32 = arith.constant 1 : i32
    %35 = arith.cmpi eq, %arg0, %c1_i32 : i32
    %36 = arith.extui %35 : i1 to i32
    %c0_i32_13 = arith.constant 0 : i32
    %37 = arith.cmpi ne, %36, %c0_i32_13 : i32
    scf.if %37 {
      %c0_14 = arith.constant 0 : index
      %c0_15 = arith.constant 0 : index
      %38 = vector.load %arg4[%c0_14, %c0_15] : memref<1x8xf32, #tpu.memory_space<vmem>>, vector<1x8xf32>
      %cst_16 = arith.constant 6.250000e-02 : f32
      %39 = vector.broadcast %cst_16 : f32 to vector<1x8xf32>
      %40 = arith.mulf %38, %39 : vector<1x8xf32>
      %cst_17 = arith.constant 9.99999993E-9 : f32
      %41 = vector.broadcast %cst_17 : f32 to vector<1x8xf32>
      %42 = arith.addf %41, %40 : vector<1x8xf32>
      %43 = math.log %42 : vector<1x8xf32>
      %44 = vector.shape_cast %43 : vector<1x8xf32> to vector<1x1x8xf32>
      %cst_18 = arith.constant dense<0.000000e+00> : vector<1xf32>
      %45 = vector.multi_reduction <add>, %44, %cst_18 [1, 2] : vector<1x1x8xf32> to vector<1xf32>
      %46 = vector.shape_cast %45 : vector<1xf32> to vector<1x1x1xf32>
      %47 = vector.extract %46[0, 0, 0] : f32 from vector<1x1x1xf32>
      %48 = vector.broadcast %47 : f32 to vector<1x1xf32>
      %cst_19 = arith.constant -1.250000e-01 : f32
      %49 = vector.broadcast %cst_19 : f32 to vector<1x1xf32>
      %50 = arith.mulf %49, %48 : vector<1x1xf32>
      %c0_20 = arith.constant 0 : index
      %c0_21 = arith.constant 0 : index
      %51 = vector.load %arg3[%c0_20, %c0_21] : memref<1x1xf32, #tpu.memory_space<vmem>>, vector<1x1xf32>
      tpu.vector_store %arg3[%c0_20, %c0_21], %50 {strides = array<i32>} : memref<1x1xf32, #tpu.memory_space<vmem>>, vector<1x1xf32>,
    } else {
    }
    return
  }
  func.func @transform_0(%arg0: i32) -> (i32, i32) {
    %c0_i32 = arith.constant 0 : i32
    %c0_i32_0 = arith.constant 0 : i32
    return %arg0, %c0_i32 : i32, i32
  }
  func.func @transform_1(%arg0: i32) -> (i32, i32) {
    %c0_i32 = arith.constant 0 : i32
    %c0_i32_0 = arith.constant 0 : i32
    %c0_i32_1 = arith.constant 0 : i32
    return %c0_i32, %c0_i32_0 : i32, i32
  }
  func.func @transform_2(%arg0: i32) -> (i32, i32) {
    %c0_i32 = arith.constant 0 : i32
    %c0_i32_0 = arith.constant 0 : i32
    %c0_i32_1 = arith.constant 0 : i32
    return %c0_i32, %c0_i32_0 : i32, i32
  }
}

</mosaic_0001>

<llo_original>
// kernel: tpu_custom_call.1
$region0: #{tpu_custom_call.1}
  #allocation0 [shape = 'u32[]', space=smem, size = 0x4, offset = 0x4, fixed_abs, tag = 'smem constant byte address 0x4 - core index']
  #allocation1 [shape = 'u32[144,128]{1,0:T(1,128)}', space=vmem, size = 0x12000, scoped, tag = 'internal scratch']
  #allocation2 [shape = 'f32[1,8]{1,0:T(1,128)}', space=vmem, size = 0x200, scoped, tag = 'scratch operand']
  %s0 = inlined_call_operand.hbm [shape: f32[16,32], index: 0, kind: input, shape index: {}]
  %s1 = inlined_call_operand.hbm [shape: f32[8,32], index: 1, kind: input, shape index: {}]
  %s2 = inlined_call_operand.hbm [shape: f32[1,1], index: 2, kind: output, shape index: {}]
  %s3 = sld [smem:[#allocation0]]
  $region57: #{tpu_custom_call.1} parent=0
    _
  %s5 = ssub.s32 1, %s3
  %s6 = scalar_select 0, %s5, %s3
  $region1: #{tpu_custom_call.1} parent=0
    #allocation3 [shape = 'u8[8192]{0}', space=vmem, size = 0x2000, scoped, tag = 'input window, operand 0']
    #allocation4 [shape = 's32[2]{0}', space=sflag, size = 0x8, scoped, tag = 'scoped memory for tpu_custom_call.1']
    #allocation5 [shape = 's32[2]{0}', space=sflag, size = 0x8, scoped, tag = 'scoped memory for tpu_custom_call.1']
    #allocation6 [shape = 'u8[4096]{0}', space=vmem, size = 0x1000, scoped, tag = 'input window, operand 1, single buffered']
    #allocation7 [shape = 's32[1]{0}', space=sflag, size = 0x4, scoped, tag = 'scoped memory for tpu_custom_call.1']
    #allocation8 [shape = 'u8[512]{0}', space=vmem, size = 0x400, scoped, tag = 'output window, operand 0, single buffered']
    %7 = vsyncpa [#allocation4], 0
    %s8 = scalar_lea.sflag [#allocation4], 1
    %9 = vsyncpa %s8, 0
    %10 = vsyncpa [#allocation7], 0
    %11 = vsyncpa [#allocation5], 0
    loop: start=0, step=1, limit=4
    $region2: #{tpu_custom_call.1} parent=1 // loop_pre_header
      _
    $region3: #{tpu_custom_call.1} parent=1 // loop_header
      %s13 = sphi 0, %s17
      %p14 = scmp.ge.s32.totalorder %s13, 4
      %s23 = sphi 0, %s25
      %s26 = sphi 0, %s23
      %s27 = sphi 0, %s26
      %s43 = sphi 0, %s27
      %s47 = sphi 0, %s47
      %s49 = sphi 0, %s47
      %s50 = sphi 0, %s49
      %s64 = sphi 0, %s50
      %s68 = sphi 0, %s68
      %s70 = sphi 0, %s68
      %s71 = sphi 0, %s70
      %s85 = sphi 0, %s71
    $region4: #{tpu_custom_call.1} parent=1 // loop_header_branch
      %16 = sbr.rel (%p14) target = $region8
    $region5: #{tpu_custom_call.1} parent=1 // loop_body
      %s18 = ssub.s32 %s13, 1
      %s19 = ssub.s32 %s13, 2
      %s20 = sadd.s32 %s13, 1
      %s21 = ssub.s32 %s13, %s20
      %p22 = scmp.eq.s32.totalorder %s21, 0
      %s24 = sadd.s32 %s23, 1
      %s25 = scalar_select %p22, %s23, %s24
      %p28 = pneg %p22
      %p29 = scmp.eq.s32.totalorder %s13, 1
      %p30 = por %p28, %p29
      %p31 = scmp.ne.s32.totalorder %s23, %s26
      %p32 = scmp.eq.s32.totalorder %s13, 0
      %p33 = por %p31, %p32
      %p34 = scmp.ne.s32.totalorder %s23, %s26
      %p35 = scmp.eq.s32.totalorder %s18, 1
      %p36 = por %p34, %p35
      %p37 = scmp.ne.s32.totalorder %s26, %s27
      %p38 = scmp.eq.s32.totalorder %s18, 0
      %p39 = por %p37, %p38
      %p40 = scmp.ne.s32.totalorder %s26, %s27
      %p41 = scmp.eq.s32.totalorder %s19, 1
      %p42 = por %p40, %p41
      %p44 = scmp.ne.s32.totalorder %s27, %s43
      %p45 = scmp.eq.s32.totalorder %s19, 0
      %p46 = por %p44, %p45
      %s48 = sadd.s32 %s47, 1
      %p51 = scmp.eq.s32.totalorder %s13, 1
      %p52 = scmp.ne.s32.totalorder %s47, %s49
      %p53 = scmp.eq.s32.totalorder %s13, 0
      %p54 = por %p52, %p53
      %p55 = scmp.ne.s32.totalorder %s47, %s49
      %p56 = scmp.eq.s32.totalorder %s18, 1
      %p57 = por %p55, %p56
      %p58 = scmp.ne.s32.totalorder %s49, %s50
      %p59 = scmp.eq.s32.totalorder %s18, 0
      %p60 = por %p58, %p59
      %p61 = scmp.ne.s32.totalorder %s49, %s50
      %p62 = scmp.eq.s32.totalorder %s19, 1
      %p63 = por %p61, %p62
      %p65 = scmp.ne.s32.totalorder %s50, %s64
      %p66 = scmp.eq.s32.totalorder %s19, 0
      %p67 = por %p65, %p66
      %s69 = sadd.s32 %s68, 1
      %p72 = scmp.eq.s32.totalorder %s13, 1
      %p73 = scmp.ne.s32.totalorder %s68, %s70
      %p74 = scmp.eq.s32.totalorder %s13, 0
      %p75 = por %p73, %p74
      %p76 = scmp.ne.s32.totalorder %s68, %s70
      %p77 = scmp.eq.s32.totalorder %s18, 1
      %p78 = por %p76, %p77
      %p79 = scmp.ne.s32.totalorder %s70, %s71
      %p80 = scmp.eq.s32.totalorder %s18, 0
      %p81 = por %p79, %p80
      %p82 = scmp.ne.s32.totalorder %s70, %s71
      %p83 = scmp.eq.s32.totalorder %s19, 1
      %p84 = por %p82, %p83
      %p86 = scmp.ne.s32.totalorder %s71, %s85
      %p87 = scmp.eq.s32.totalorder %s19, 0
      %p88 = por %p86, %p87
      %p89 = scmp.le.s32.totalorder 1, %s13
      %p90 = scmp.lt.s32.totalorder %s13, 3
      %p91 = pnand %p89, %p90
      %p92 = pneg %p91
      // Predicated region
      $region9: #{tpu_custom_call.1} parent=5 // pred_check
        _
      $region10: #{tpu_custom_call.1} parent=5 // pred_check_branch
        %94 = sbr.rel (%p91) target = $region12
      $region11: #{tpu_custom_call.1} parent=5 // pred_region
        %s95 = ssub.s32 %s13, 1
        // Predicated region
        $region13: #{tpu_custom_call.1} parent=11 // pred_check
          %p96 = pneg %p60
        $region14: #{tpu_custom_call.1} parent=11 // pred_check_branch
          %98 = sbr.rel (%p96) target = $region16
        $region15: #{tpu_custom_call.1} parent=11 // pred_region
          %s100 = ssub.s32 128, 128
          %101 = vsyncadd [#allocation7], %s100
          %s103 = sshll.u32 [#allocation6], 4
          %s104 = int_to_ptr.vmem [resolvable:$true] %s103
          %106 = dma.hbm_to_vmem [thread:$0]  %s1, 128, %s104, [#allocation7]
        $region16: #{tpu_custom_call.1} parent=11 // pred_fallthru
          _
      $region12: #{tpu_custom_call.1} parent=5 // pred_fallthru
        _
      %p107 = scmp.lt.s32.totalorder %s13, 2
      // Predicated region
      $region17: #{tpu_custom_call.1} parent=5 // pred_check
        %p108 = pneg %p107
      $region18: #{tpu_custom_call.1} parent=5 // pred_check_branch
        %110 = sbr.rel (%p108) target = $region20
      $region19: #{tpu_custom_call.1} parent=5 // pred_region
        // Predicated region
        $region21: #{tpu_custom_call.1} parent=19 // pred_check
          %p111 = pneg %p33
        $region22: #{tpu_custom_call.1} parent=19 // pred_check_branch
          %113 = sbr.rel (%p111) target = $region24
        $region23: #{tpu_custom_call.1} parent=19 // pred_region
          %s114 = sand.u32 %s23, 1
          %s115 = scalar_lea.sflag [#allocation4], %s114
          %s116 = sand.u32 %s23, 1
          %s117 = smul.addr %s116, 8
          %s118 = scalar_lea.vmem [#allocation3], %s117
          %s120 = ssub.s32 128, 128
          %121 = vsyncadd %s115, %s120
          %s122 = smul.addr %s13, 128
          %s123 = scalar_lea.hbm %s0, %s122
          %s125 = sshll.u32 %s118, 4
          %s126 = int_to_ptr.vmem [resolvable:$true] %s125
          %128 = dma.hbm_to_vmem [thread:$0]  %s123, 128, %s126, %s115
        $region24: #{tpu_custom_call.1} parent=19 // pred_fallthru
          _
      $region20: #{tpu_custom_call.1} parent=5 // pred_fallthru
        _
      %p129 = scmp.le.s32.totalorder 1, %s13
      %p130 = scmp.lt.s32.totalorder %s13, 3
      %p131 = pnand %p129, %p130
      %p132 = pneg %p131
      // Predicated region
      $region25: #{tpu_custom_call.1} parent=5 // pred_check
        _
      $region26: #{tpu_custom_call.1} parent=5 // pred_check_branch
        %134 = sbr.rel (%p131) target = $region28
      $region27: #{tpu_custom_call.1} parent=5 // pred_region
        %s135 = ssub.s32 %s13, 1
        %s136 = sand.u32 %s26, 1
        %s137 = scalar_lea.sflag [#allocation4], %s136
        %s138 = sand.u32 %s26, 1
        %s139 = smul.addr %s138, 8
        %s140 = scalar_lea.vmem [#allocation3], %s139
        // Predicated region
        $region29: #{tpu_custom_call.1} parent=27 // pred_check
          %p141 = pneg %p39
        $region30: #{tpu_custom_call.1} parent=27 // pred_check_branch
          %143 = sbr.rel (%p141) target = $region32
        $region31: #{tpu_custom_call.1} parent=27 // pred_region
          %144 = dma.done %s137, 128
        $region32: #{tpu_custom_call.1} parent=27 // pred_fallthru
          _
        // Predicated region
        $region33: #{tpu_custom_call.1} parent=27 // pred_check
          %p145 = pneg %p60
        $region34: #{tpu_custom_call.1} parent=27 // pred_check_branch
          %147 = sbr.rel (%p145) target = $region36
        $region35: #{tpu_custom_call.1} parent=27 // pred_region
          %148 = dma.done [#allocation7], 128
        $region36: #{tpu_custom_call.1} parent=27 // pred_fallthru
          _
        %s149 = sand.u32 %s26, 1
        %s150 = scalar_lea.sflag [#allocation4], %s149
        %s151 = sand.u32 %s26, 1
        %s152 = smul.addr %s151, 8
        %s153 = scalar_lea.vmem [#allocation3], %s152
        %p154 = pneg %p39
        %p155 = pneg %p36
        %p156 = pneg %p60
        %p157 = pneg %p57
        %p158 = pneg %p81
        %p159 = pneg %p78
        %p160 = scmp.eq.s32.totalorder %s18, 0
        // Predicated region
        $region37: #{tpu_custom_call.1} parent=27 // pred_check
          %p161 = pneg %p160
        $region38: #{tpu_custom_call.1} parent=27 // pred_check_branch
          %163 = sbr.rel (%p161) target = $region40
        $region39: #{tpu_custom_call.1} parent=27 // pred_region
          %vm164 = vcmask 57344
          %165 = vst.msk [vmem:[#allocation2] sm:$0x1] %vm164, 0.0
        $region40: #{tpu_custom_call.1} parent=27 // pred_fallthru
          _
        %v166 = vld [vmem:[%s140] sm:$0xff]
        %v167 = vld [vmem:[#allocation6] sm:$0xff]
        %vm168 = vcmask 261120
        %v170 = vsel %vm168, %v166, 0
        %v173 = vsel %vm168, %v167, 0
        %175 = vmatprep.subr.mxu0 0.0
        %176 = vmatpush1.xpose.msra.mxu0 %v173
        %177 = vmatprep.subr.mxu0 0.0
        %178 = vmatpush1.xpose.msra.mxu0 0.0
        %179 = vmatprep.subr.mxu0 0.0
        %180 = vmatpush1.xpose.msra.mxu0 0.0
        %181 = vmatprep.subr.mxu0 0.0
        %182 = vmatpush1.xpose.msra.mxu0 0.0
        %183 = vmatprep.subr.mxu0 0.0
        %184 = vmatpush1.xpose.msra.mxu0 0.0
        %185 = vmatprep.subr.mxu0 0.0
        %186 = vmatpush1.xpose.msra.mxu0 0.0
        %187 = vmatprep.subr.mxu0 0.0
        %188 = vmatpush1.xpose.msra.mxu0 0.0
        %189 = vmatprep.subr.mxu0 0.0
        %190 = vmatpush1.xpose.msra.mxu0 0.0
        %191 = vmatprep.subr.mxu0 0.0
        %192 = vmatpush1.xpose.msra.mxu0 0.0
        %193 = vmatprep.subr.mxu0 0.0
        %194 = vmatpush1.xpose.msra.mxu0 0.0
        %195 = vmatprep.subr.mxu0 0.0
        %196 = vmatpush1.xpose.msra.mxu0 0.0
        %197 = vmatprep.subr.mxu0 0.0
        %198 = vmatpush1.xpose.msra.mxu0 0.0
        %199 = vmatprep.subr.mxu0 0.0
        %200 = vmatpush1.xpose.msra.mxu0 0.0
        %201 = vmatprep.subr.mxu0 0.0
        %202 = vmatpush1.xpose.msra.mxu0 0.0
        %203 = vmatprep.subr.mxu0 0.0
        %204 = vmatpush1.xpose.msra.mxu0 0.0
        %205 = vmatprep.subr.mxu0 0.0
        %206 = vmatpush1.xpose.msra.mxu0 0.0
        %207 = vmatprep.subr.mxu0 0.0
        %208 = vmatpush1.xpose.msra.mxu0 0.0
        %209 = vmatprep.subr.mxu0 0.0
        %210 = vmatpush1.xpose.msra.mxu0 0.0
        %211 = vmatprep.subr.mxu0 0.0
        %212 = vmatpush1.xpose.msra.mxu0 0.0
        %213 = vmatprep.subr.mxu0 0.0
        %214 = vmatpush1.xpose.msra.mxu0 0.0
        %215 = vmatprep.subr.mxu0 0.0
        %216 = vmatpush1.xpose.msra.mxu0 0.0
        %217 = vmatprep.subr.mxu0 0.0
        %218 = vmatpush1.xpose.msra.mxu0 0.0
        %219 = vmatprep.subr.mxu0 0.0
        %220 = vmatpush1.xpose.msra.mxu0 0.0
        %221 = vmatprep.subr.mxu0 0.0
        %222 = vmatpush1.xpose.msra.mxu0 0.0
        %223 = vmatprep.subr.mxu0 0.0
        %224 = vmatpush1.xpose.msra.mxu0 0.0
        %225 = vmatprep.subr.mxu0 0.0
        %226 = vmatpush1.xpose.msra.mxu0 0.0
        %227 = vmatprep.subr.mxu0 0.0
        %228 = vmatpush1.xpose.msra.mxu0 0.0
        %229 = vmatprep.subr.mxu0 0.0
        %230 = vmatpush1.xpose.msra.mxu0 0.0
        %231 = vmatprep.subr.mxu0 0.0
        %232 = vmatpush1.xpose.msra.mxu0 0.0
        %233 = vmatprep.subr.mxu0 0.0
        %234 = vmatpush1.xpose.msra.mxu0 0.0
        %235 = vmatprep.subr.mxu0 0.0
        %236 = vmatpush1.xpose.msra.mxu0 0.0
        %237 = vmatprep.subr.mxu0 0.0
        %238 = vmatpush1.xpose.msra.mxu0 0.0
        %239 = vmatprep.mubr.f32.mxu0 0.0
        %240 = vmatmul.mubr.f32.gmra.mrb[0].mxu0 %v170
        %v241 = vpop.f32.mrb[0].mxu0
        %v242 = vadd.f32 0.0, %v241
        %v243 = vpop.f32.mrb[0].mxu0
        %244 = vdwg.mxu0
        %v245 = vlaneseq
        %v246 = vshrl.u32 %v245, 7
        %s247 = smul.u32 %s18, 8
        %v248 = vstv %s247
        %v249 = vadd.s32 %v246, %v248
        %vm250 = vcmp.lt.s32.totalorder %v249, 16
        %v251 = vsel %vm250, 1, 0
        %vm252 = vcmp.eq.s32.totalorder %v251, 1
        %v253 = vsel %vm252, %v242, 0.0
        %vm254 = vcmask 64512
        %v255 = vsel %vm254, %v253, -inf
        %256 = vmax.xlane.f32.xlu0 %v255
        %v257 = vpop.xlane.xlu0 %256
        %v258 = vsub.f32 %v253, %v257
        %v259 = vmul.f32 %v258, 1.442695
        %v260 = vpow.pop %v259
        %v261 = vsel %vm254, %v260, 0.0
        %262 = vadd.xlane.f32.xlu0 %v261
        %v263 = vpop.xlane.xlu0 %262
        %v264 = vrcp.pop %v263
        %v265 = vmul.f32 %v260, %v264
        %v266 = vsel %vm252, %v265, 0.0
        %v267 = vld [vmem:[#allocation2] sm:$0x1]
        %v268 = vsel %vm254, %v266, 0.0
        %v269 = vrot.slane %v268, 4
        %v270 = vadd.f32 %v268, %v269
        %v271 = vrot.slane %v270, 2
        %v272 = vadd.f32 %v270, %v271
        %v273 = vrot.slane %v272, 1
        %v274 = vadd.f32 %v272, %v273
        %v275 = vadd.f32 %v267, %v274
        %vm276 = vcmask 57344
        %277 = vst.msk [vmem:[#allocation2] sm:$0x1] %vm276, %v275
        %p278 = scmp.eq.s32.totalorder %s18, 1
        // Predicated region
        $region41: #{tpu_custom_call.1} parent=27 // pred_check
          %p279 = pneg %p278
        $region42: #{tpu_custom_call.1} parent=27 // pred_check_branch
          %281 = sbr.rel (%p279) target = $region44
        $region43: #{tpu_custom_call.1} parent=27 // pred_region
          %v282 = vld [vmem:[#allocation2] sm:$0x1]
          %v283 = vmul.f32 %v282, 0.0625
          %v284 = vadd.f32 %v283, 1e-08
          %v285 = vlog2.pop %v284
          %v286 = vmul.f32 %v285, 0.6931472
          %v287 = vsel %vm276, %v286, 0.0
          %288 = vadd.xlane.f32.xlu0 %v287
          %v289 = vpop.xlane.xlu0 %288
          %v290 = vrot.slane %v289, 4
          %v291 = vadd.f32 %v289, %v290
          %v292 = vrot.slane %v291, 2
          %v293 = vadd.f32 %v291, %v292
          %v294 = vrot.slane %v293, 1
          %v295 = vadd.f32 %v293, %v294
          %s296 = vtos %v295
          %v297 = vstv %s296
          %v298 = vmul.f32 %v297, -0.125
          %vm299 = vcmask 0
          %300 = vst.msk [vmem:[#allocation8] sm:$0x1] %vm299, %v298
        $region44: #{tpu_custom_call.1} parent=27 // pred_fallthru
          _
        // Predicated region
        $region45: #{tpu_custom_call.1} parent=27 // pred_check
          %p301 = pneg %p78
        $region46: #{tpu_custom_call.1} parent=27 // pred_check_branch
          %303 = sbr.rel (%p301) target = $region48
        $region47: #{tpu_custom_call.1} parent=27 // pred_region
          %s305 = ssub.s32 16, 16
          %306 = vsyncadd [#allocation5], %s305
          %s308 = sshll.u32 [#allocation8], 4
          %s309 = int_to_ptr.vmem [resolvable:$true] %s308
          %311 = dma.vmem_to_hbm [thread:$0]  %s309, 16, %s2, [#allocation5]
        $region48: #{tpu_custom_call.1} parent=27 // pred_fallthru
          _
        // Predicated region
        $region49: #{tpu_custom_call.1} parent=27 // pred_check
          %p312 = pneg %p78
        $region50: #{tpu_custom_call.1} parent=27 // pred_check_branch
          %314 = sbr.rel (%p312) target = $region52
        $region51: #{tpu_custom_call.1} parent=27 // pred_region
          %315 = dma.done [#allocation5], 16
        $region52: #{tpu_custom_call.1} parent=27 // pred_fallthru
          _
      $region28: #{tpu_custom_call.1} parent=5 // pred_fallthru
        _
      %p316 = scmp.le.s32.totalorder 2, %s13
      // Predicated region
      $region53: #{tpu_custom_call.1} parent=5 // pred_check
        %p317 = pneg %p316
      $region54: #{tpu_custom_call.1} parent=5 // pred_check_branch
        %319 = sbr.rel (%p317) target = $region56
      $region55: #{tpu_custom_call.1} parent=5 // pred_region
        %s320 = ssub.s32 %s13, 2
      $region56: #{tpu_custom_call.1} parent=5 // pred_fallthru
        _
    $region6: #{tpu_custom_call.1} parent=1 // loop_footer
      %s17 = sadd.s32 1, %s13
    $region7: #{tpu_custom_call.1} parent=1 // loop_footer_branch
      %12 = sbr.rel target = $region3
    $region8: #{tpu_custom_call.1} parent=1 // loop_exit
      _
    %321 = vsyncpa [#allocation4], 1
    %s322 = scalar_lea.sflag [#allocation4], 1
    %323 = vsyncpa %s322, 1
    %324 = vsyncpa [#allocation7], 1
    %325 = vsyncpa [#allocation5], 1
    %s326 = scalar_lea.sflag [#allocation5], 1
    %327 = vsyncpa %s326, 1

</llo_original>
